<compile_context>
chip_gen: v7x
topology: tpu7x:2x2x1
jax: 0.10.0
libtpu: 0.0.40
codegen_flags: <defaults>
</compile_context>

<pallas_src>
import functools

import jax
import jax.numpy as jnp
from jax.experimental import pallas as pl
from jax.experimental.pallas import tpu as pltpu


def _round_up(x, m):
    return (x + m - 1) // m * m


def _default_budgets():
    """Return (max_tile_bytes, vmem_limit_bytes); generation-aware when query-able."""
    # Safe everywhere, including v7x (64 MiB VMEM per TensorCore).
    tile_bytes, vmem_limit = 2 * 1024 * 1024, 48 * 1024 * 1024
    try:
        cap = int(getattr(pltpu.get_tpu_info(), "vmem_capacity_bytes", 0))
        if cap >= 96 * 1024 * 1024:           # v5e / v6e: 128 MiB VMEM -> bigger tiles
            tile_bytes, vmem_limit = 6 * 1024 * 1024, 64 * 1024 * 1024
    except Exception:
        pass                                   # keep conservative defaults
    return tile_bytes, vmem_limit


def _ls_ce_kernel(logits_ref, target_ref, out_ref, *,
                  n_rows, n_classes, tile_rows, ignore_index):
    i = pl.program_id(0)

    x = logits_ref[...]                        # (tile_rows, C), native dtype
    tgt = target_ref[...]                      # (tile_rows, 1) int32

    # Row-wise log-sum-exp over the full (logical) class axis — no class padding and
    # no class mask: the block's last dim equals the array's class extent.
    m = jnp.max(x, axis=-1, keepdims=True).astype(jnp.float32)            # (rows, 1)
    s = jnp.sum(jnp.exp(x.astype(jnp.float32) - m), axis=-1, keepdims=True)
    lse = m + jnp.log(s)                                                  # (rows, 1)

    # sum_c x over the class axis (smoothing term), f32 accumulation.
    sum_x = jnp.sum(x, axis=-1, keepdims=True, dtype=jnp.float32)

    # x[i, target[i]] via one-hot compare; the (1, C) iota broadcasts over rows
    # (ignore_index never matches any class lane).
    class_ids = jax.lax.broadcasted_iota(jnp.int32, (1, n_classes), 1)
    x_t = jnp.sum(jnp.where(class_ids == tgt, x, 0),
                  axis=-1, keepdims=True, dtype=jnp.float32)

    # Mask rows of the (possibly ragged) last tile.  Use selects — never multiply —
    # so garbage/NaN lanes from the partially out-of-bounds edge DMA cannot leak in.
    row_ids = i * tile_rows + jax.lax.broadcasted_iota(jnp.int32, (tile_rows, 1), 0)
    row_valid = row_ids < n_rows
    tgt_valid = jnp.logical_and(row_valid, tgt != ignore_index)

    smooth_sum = jnp.sum(jnp.where(row_valid, n_classes * lse - sum_x, 0.0))
    nll_sum = jnp.sum(jnp.where(tgt_valid, lse - x_t, 0.0))
    valid_cnt = jnp.sum(jnp.where(tgt_valid, 1.0, 0.0))

    # Lane-dense (1, 8, 128) partial-result block: [smooth_sum, nll_sum, valid_cnt, 0...]
    lane = jax.lax.broadcasted_iota(jnp.int32, (1, 8, 128), 2)
    sub = jax.lax.broadcasted_iota(jnp.int32, (1, 8, 128), 1)
    vals = jnp.where(lane == 0, smooth_sum,
                     jnp.where(lane == 1, nll_sum,
                               jnp.where(lane == 2, valid_cnt, 0.0)))
    out_ref[...] = jnp.where(sub == 0, vals, 0.0)


def label_smoothing_cross_entropy(output, target, *, eps=0.1, reduction="mean",
                                  ignore_index=-100,
                                  max_tile_bytes=None, vmem_limit_bytes=None):
    """output: [N, C] logits (f32 or bf16); target: [N] int class indices."""
    n_rows, n_classes = output.shape
    assert target.shape == (n_rows,)
    if reduction not in ("mean", "sum"):
        # TODO(synk): reduction='none' (per-row loss vector output) not implemented.
        raise NotImplementedError("reduction must be 'mean' or 'sum'")

    if max_tile_bytes is None or vmem_limit_bytes is None:
        auto_tile, auto_vmem = _default_budgets()
        if max_tile_bytes is None:
            max_tile_bytes = auto_tile
        if vmem_limit_bytes is None:
            vmem_limit_bytes = auto_vmem

    itemsize = jnp.dtype(output.dtype).itemsize
    c_lanes = _round_up(n_classes, 128)        # VMEM lane footprint of one row

    # VMEM-budgeted row tile: input tile ~max_tile_bytes so that 2 pipeline buffers
    # per input plus the in-kernel f32 temporaries stay well inside vmem_limit_bytes.
    tile_rows = max(1, max_tile_bytes // (c_lanes * itemsize))
    tile_rows = min(tile_rows, 2048, _round_up(n_rows, 8))
    tile_rows = max(8, (tile_rows // 8) * 8)
    num_tiles = -(-n_rows // tile_rows)        # cdiv; last tile may be ragged

    tgt2d = target.astype(jnp.int32).reshape(n_rows, 1)   # no padding, reshape only

    kernel = functools.partial(_ls_ce_kernel, n_rows=n_rows, n_classes=n_classes,
                               tile_rows=tile_rows, ignore_index=ignore_index)

    partials = pl.pallas_call(
        kernel,
        out_shape=jax.ShapeDtypeStruct((num_tiles, 8, 128), jnp.float32),
        grid_spec=pltpu.PrefetchScalarGridSpec(
            num_scalar_prefetch=0,
            grid=(num_tiles,),
            in_specs=[
                # Last dim == full class extent (no 128 padding needed); row tiles are
                # multiples of 8 and the ragged edge tile is masked in-kernel.
                pl.BlockSpec((tile_rows, n_classes), lambda i: (i, 0)),
                pl.BlockSpec((tile_rows, 1), lambda i: (i, 0)),
            ],
            out_specs=pl.BlockSpec((1, 8, 128), lambda i: (i, 0, 0)),
        ),
        compiler_params=pltpu.CompilerParams(
            dimension_semantics=("parallel",),   # independent tiles -> megacore-friendly
            vmem_limit_bytes=vmem_limit_bytes,
        ),
    )(output, tgt2d)

    sums = jnp.sum(partials, axis=(0, 1))        # (128,), only lanes 0..2 nonzero
    smooth_sum, nll_sum, valid_cnt = sums[0], sums[1], sums[2]

    if reduction == "sum":
        return smooth_sum * (eps / n_classes) + (1.0 - eps) * nll_sum
    # 'mean': smoothing term averages over ALL rows (torch behavior, incl. ignored);
    #         NLL averages over non-ignored rows only (NaN if every row is ignored,
    #         matching torch).
    return (smooth_sum / n_rows) * (eps / n_classes) + (1.0 - eps) * (nll_sum / valid_cnt)


def _reference(output, target, eps=0.1, reduction="mean", ignore_index=-100):
    c = output.shape[-1]
    logp = jax.nn.log_softmax(output.astype(jnp.float32), axis=-1)
    if reduction == "sum":
        smooth = -jnp.sum(logp)
    else:
        smooth = jnp.mean(-jnp.sum(logp, axis=-1))
    valid = target != ignore_index
    tsafe = jnp.where(valid, target, 0)
    picked = jnp.take_along_axis(logp, tsafe[:, None], axis=-1)[:, 0]
    nll_rows = jnp.where(valid, -picked, 0.0)
    if reduction == "sum":
        nll = jnp.sum(nll_rows)
    else:
        nll = jnp.sum(nll_rows) / jnp.sum(valid)
    return smooth * eps / c + (1.0 - eps) * nll


if __name__ == "__main__":
    key = jax.random.PRNGKey(0)
    k1, k2, k3, k4 = jax.random.split(key, 4)

    # Case 1: batch=2, seq=8, classes=32 -> N = 16 rows (single tile).
    n1, c1 = 2 * 8, 32
    logits1 = jax.random.normal(k1, (n1, c1), dtype=jnp.float32) * 2.0
    target1 = jax.random.randint(k2, (n1,), 0, c1, dtype=jnp.int32)
    target1 = target1.at[3].set(-100)            # exercise ignore_index handling

    loss1 = jax.block_until_ready(
        label_smoothing_cross_entropy(logits1, target1, eps=0.1, reduction="mean"))
    ref1 = _reference(logits1, target1, eps=0.1, reduction="mean")
    assert jnp.allclose(loss1, ref1, rtol=1e-4, atol=1e-5), (loss1, ref1)

    # Case 2: ragged shapes (N not a multiple of the tile, C not a multiple of 128)
    # with a multi-tile grid -> exercises the no-padding path + in-kernel edge masking.
    n2, c2 = 40, 33
    logits2 = jax.random.normal(k3, (n2, c2), dtype=jnp.float32) * 3.0
    target2 = jax.random.randint(k4, (n2,), 0, c2, dtype=jnp.int32)
    target2 = target2.at[0].set(-100)
    target2 = target2.at[37].set(-100)

    loss2 = jax.block_until_ready(
        label_smoothing_cross_entropy(logits2, target2, eps=0.1, reduction="mean",
                                      max_tile_bytes=8192))   # force tile_rows=16, 3 tiles
    ref2 = _reference(logits2, target2, eps=0.1, reduction="mean")
    assert jnp.allclose(loss2, ref2, rtol=1e-4, atol=1e-5), (loss2, ref2)

    print("KERNEL_OK")
</pallas_src>

<mosaic_0001>
module attributes {stable_mosaic.version = 11 : i64} {
  func.func @_ls_ce_kernel(%arg0: i32, %arg1: memref<16x32xf32, #tpu.memory_space<vmem>>, %arg2: memref<16x1xi32, #tpu.memory_space<vmem>>, %arg3: memref<1x8x128xf32, #tpu.memory_space<vmem>>) attributes {dimension_semantics = [#tpu.dimension_semantics<parallel>], iteration_bounds = array<i64: 1>, scalar_prefetch = 0 : i64, scratch_operands = 0 : i64, tpu.core_type = #tpu.core_type<tc>, window_params = [{transform_indices = @transform_0, window_bounds = array<i64: 16, 32>}, {transform_indices = @transform_1, window_bounds = array<i64: 16, 1>}, {transform_indices = @transform_2, window_bounds = array<i64: 1, 8, 128>}]} {
    %c0 = arith.constant 0 : index
    %c0_0 = arith.constant 0 : index
    %0 = vector.load %arg1[%c0, %c0_0] : memref<16x32xf32, #tpu.memory_space<vmem>>, vector<16x32xf32>
    %c0_1 = arith.constant 0 : index
    %c0_2 = arith.constant 0 : index
    %1 = vector.load %arg2[%c0_1, %c0_2] : memref<16x1xi32, #tpu.memory_space<vmem>>, vector<16x1xi32>
    %cst = arith.constant dense<0xFF800000> : vector<16xf32>
    %2 = vector.multi_reduction <maximumf>, %0, %cst [1] : vector<16x32xf32> to vector<16xf32>
    %3 = vector.shape_cast %2 : vector<16xf32> to vector<16x1xf32>
    %4 = vector.broadcast %3 : vector<16x1xf32> to vector<16x32xf32>
    %5 = arith.subf %0, %4 : vector<16x32xf32>
    %6 = math.exp %5 : vector<16x32xf32>
    %cst_3 = arith.constant dense<0.000000e+00> : vector<16xf32>
    %7 = vector.multi_reduction <add>, %6, %cst_3 [1] : vector<16x32xf32> to vector<16xf32>
    %8 = vector.shape_cast %7 : vector<16xf32> to vector<16x1xf32>
    %9 = math.log %8 : vector<16x1xf32>
    %10 = arith.addf %3, %9 : vector<16x1xf32>
    %cst_4 = arith.constant dense<0.000000e+00> : vector<16xf32>
    %11 = vector.multi_reduction <add>, %0, %cst_4 [1] : vector<16x32xf32> to vector<16xf32>
    %12 = vector.shape_cast %11 : vector<16xf32> to vector<16x1xf32>
    %13 = tpu.iota {dimensions = array<i32: 1>} : vector<1x32xi32>
    %14 = vector.broadcast %13 : vector<1x32xi32> to vector<16x32xi32>
    %15 = vector.broadcast %1 : vector<16x1xi32> to vector<16x32xi32>
    %16 = arith.cmpi eq, %14, %15 : vector<16x32xi32>
    %c0_i32 = arith.constant 0 : i32
    %17 = arith.sitofp %c0_i32 : i32 to f32
    %18 = vector.broadcast %17 : f32 to vector<16x32xf32>
    %19 = arith.select %16, %0, %18 : vector<16x32xi1>, vector<16x32xf32>
    %cst_5 = arith.constant dense<0.000000e+00> : vector<16xf32>
    %20 = vector.multi_reduction <add>, %19, %cst_5 [1] : vector<16x32xf32> to vector<16xf32>
    %21 = vector.shape_cast %20 : vector<16xf32> to vector<16x1xf32>
    %c16_i32 = arith.constant 16 : i32
    %22 = arith.muli %arg0, %c16_i32 : i32
    %23 = tpu.iota {dimensions = array<i32: 0>} : vector<16x1xi32>
    %24 = vector.broadcast %22 : i32 to vector<16x1xi32>
    %25 = arith.addi %24, %23 : vector<16x1xi32>
    %c16_i32_6 = arith.constant 16 : i32
    %26 = vector.broadcast %c16_i32_6 : i32 to vector<16x1xi32>
    %27 = arith.cmpi slt, %25, %26 : vector<16x1xi32>
    %c-100_i32 = arith.constant -100 : i32
    %28 = vector.broadcast %c-100_i32 : i32 to vector<16x1xi32>
    %29 = arith.cmpi ne, %1, %28 : vector<16x1xi32>
    %30 = arith.andi %27, %29 : vector<16x1xi1>
    %cst_7 = arith.constant 3.200000e+01 : f32
    %31 = vector.broadcast %cst_7 : f32 to vector<16x1xf32>
    %32 = arith.mulf %31, %10 : vector<16x1xf32>
    %33 = arith.subf %32, %12 : vector<16x1xf32>
    %cst_8 = arith.constant 0.000000e+00 : f32
    %34 = vector.broadcast %cst_8 : f32 to vector<16x1xf32>
    %35 = arith.select %27, %33, %34 : vector<16x1xi1>, vector<16x1xf32>
    %36 = vector.shape_cast %35 : vector<16x1xf32> to vector<1x16x1xf32>
    %cst_9 = arith.constant dense<0.000000e+00> : vector<1xf32>
    %37 = vector.multi_reduction <add>, %36, %cst_9 [1, 2] : vector<1x16x1xf32> to vector<1xf32>
    %38 = vector.shape_cast %37 : vector<1xf32> to vector<1x1x1xf32>
    %39 = vector.extract %38[0, 0, 0] : f32 from vector<1x1x1xf32>
    %40 = arith.subf %10, %21 : vector<16x1xf32>
    %cst_10 = arith.constant 0.000000e+00 : f32
    %41 = vector.broadcast %cst_10 : f32 to vector<16x1xf32>
    %42 = arith.select %30, %40, %41 : vector<16x1xi1>, vector<16x1xf32>
    %43 = vector.shape_cast %42 : vector<16x1xf32> to vector<1x16x1xf32>
    %cst_11 = arith.constant dense<0.000000e+00> : vector<1xf32>
    %44 = vector.multi_reduction <add>, %43, %cst_11 [1, 2] : vector<1x16x1xf32> to vector<1xf32>
    %45 = vector.shape_cast %44 : vector<1xf32> to vector<1x1x1xf32>
    %46 = vector.extract %45[0, 0, 0] : f32 from vector<1x1x1xf32>
    %cst_12 = arith.constant 1.000000e+00 : f32
    %cst_13 = arith.constant 0.000000e+00 : f32
    %47 = vector.broadcast %cst_12 : f32 to vector<16x1xf32>
    %48 = vector.broadcast %cst_13 : f32 to vector<16x1xf32>
    %49 = arith.select %30, %47, %48 : vector<16x1xi1>, vector<16x1xf32>
    %50 = vector.shape_cast %49 : vector<16x1xf32> to vector<1x16x1xf32>
    %cst_14 = arith.constant dense<0.000000e+00> : vector<1xf32>
    %51 = vector.multi_reduction <add>, %50, %cst_14 [1, 2] : vector<1x16x1xf32> to vector<1xf32>
    %52 = vector.shape_cast %51 : vector<1xf32> to vector<1x1x1xf32>
    %53 = vector.extract %52[0, 0, 0] : f32 from vector<1x1x1xf32>
    %54 = tpu.iota {dimensions = array<i32: 2>} : vector<1x8x128xi32>
    %55 = tpu.iota {dimensions = array<i32: 1>} : vector<1x8x128xi32>
    %c0_i32_15 = arith.constant 0 : i32
    %56 = vector.broadcast %c0_i32_15 : i32 to vector<1x8x128xi32>
    %57 = arith.cmpi eq, %54, %56 : vector<1x8x128xi32>
    %c1_i32 = arith.constant 1 : i32
    %58 = vector.broadcast %c1_i32 : i32 to vector<1x8x128xi32>
    %59 = arith.cmpi eq, %54, %58 : vector<1x8x128xi32>
    %c2_i32 = arith.constant 2 : i32
    %60 = vector.broadcast %c2_i32 : i32 to vector<1x8x128xi32>
    %61 = arith.cmpi eq, %54, %60 : vector<1x8x128xi32>
    %cst_16 = arith.constant 0.000000e+00 : f32
    %62 = vector.broadcast %53 : f32 to vector<1x8x128xf32>
    %63 = vector.broadcast %cst_16 : f32 to vector<1x8x128xf32>
    %64 = arith.select %61, %62, %63 : vector<1x8x128xi1>, vector<1x8x128xf32>
    %65 = vector.broadcast %46 : f32 to vector<1x8x128xf32>
    %66 = arith.select %59, %65, %64 : vector<1x8x128xi1>, vector<1x8x128xf32>
    %67 = vector.broadcast %39 : f32 to vector<1x8x128xf32>
    %68 = arith.select %57, %67, %66 : vector<1x8x128xi1>, vector<1x8x128xf32>
    %c0_i32_17 = arith.constant 0 : i32
    %69 = vector.broadcast %c0_i32_17 : i32 to vector<1x8x128xi32>
    %70 = arith.cmpi eq, %55, %69 : vector<1x8x128xi32>
    %cst_18 = arith.constant 0.000000e+00 : f32
    %71 = vector.broadcast %cst_18 : f32 to vector<1x8x128xf32>
    %72 = arith.select %70, %68, %71 : vector<1x8x128xi1>, vector<1x8x128xf32>
    %c0_19 = arith.constant 0 : index
    %c0_20 = arith.constant 0 : index
    %c0_21 = arith.constant 0 : index
    %73 = vector.load %arg3[%c0_19, %c0_20, %c0_21] : memref<1x8x128xf32, #tpu.memory_space<vmem>>, vector<1x8x128xf32>
    tpu.vector_store %arg3[%c0_19, %c0_20, %c0_21], %72 {strides = array<i32>} : memref<1x8x128xf32, #tpu.memory_space<vmem>>, vector<1x8x128xf32>,
    return
  }
  func.func @transform_0(%arg0: i32) -> (i32, i32) {
    %c0_i32 = arith.constant 0 : i32
    %c0_i32_0 = arith.constant 0 : i32
    return %arg0, %c0_i32 : i32, i32
  }
  func.func @transform_1(%arg0: i32) -> (i32, i32) {
    %c0_i32 = arith.constant 0 : i32
    %c0_i32_0 = arith.constant 0 : i32
    return %arg0, %c0_i32 : i32, i32
  }
  func.func @transform_2(%arg0: i32) -> (i32, i32, i32) {
    %c0_i32 = arith.constant 0 : i32
    %c0_i32_0 = arith.constant 0 : i32
    %c0_i32_1 = arith.constant 0 : i32
    return %arg0, %c0_i32, %c0_i32_0 : i32, i32, i32
  }
}

</mosaic_0001>

<llo_original>
// kernel: tpu_custom_call.1
$region0: #{tpu_custom_call.1}
  #allocation0 [shape = 'u32[]', space=smem, size = 0x4, offset = 0x4, fixed_abs, tag = 'smem constant byte address 0x4 - core index']
  #allocation1 [shape = 'u32[144,128]{1,0:T(1,128)}', space=vmem, size = 0x12000, scoped, tag = 'internal scratch']
  %s0 = inlined_call_operand.vmem [shape: f32[16,32], index: 0, kind: input, shape index: {}]
  %s1 = inlined_call_operand.vmem [shape: s32[16,1], index: 1, kind: input, shape index: {}]
  %s2 = inlined_call_operand.hbm [shape: f32[1,8,128], index: 2, kind: output, shape index: {}]
  %s3 = sld [smem:[#allocation0]]
  $region18: #{tpu_custom_call.1} parent=0
    _
  %s5 = ssub.s32 1, %s3
  %s6 = scalar_select 0, %s5, %s3
  $region1: #{tpu_custom_call.1} parent=0
    #allocation2 [shape = 'u8[4096]{0}', space=vmem, size = 0x1000, scoped, tag = 'output window, operand 0, single buffered']
    #allocation3 [shape = 's32[1]{0}', space=sflag, size = 0x4, scoped, tag = 'scoped memory for tpu_custom_call.1']
    %7 = vsyncpa [#allocation3], 0
    // Predicated region
    $region2: #{tpu_custom_call.1} parent=1 // pred_check
      _
    $region3: #{tpu_custom_call.1} parent=1 // pred_check_branch
      %9 = sbr.rel (0) target = $region5
    $region4: #{tpu_custom_call.1} parent=1 // pred_region
      _
    $region5: #{tpu_custom_call.1} parent=1 // pred_fallthru
      _
    // Predicated region
    $region6: #{tpu_custom_call.1} parent=1 // pred_check
      _
    $region7: #{tpu_custom_call.1} parent=1 // pred_check_branch
      %11 = sbr.rel (0) target = $region9
    $region8: #{tpu_custom_call.1} parent=1 // pred_region
      _
    $region9: #{tpu_custom_call.1} parent=1 // pred_fallthru
      _
    %v12 = vld [vmem:[%s0] sm:$0xff]
    %v13 = vld [vmem:[%s0 + $0x8] sm:$0xff]
    %v14 = vld [vmem:[%s1] sm:$0xff]
    %v15 = vld [vmem:[%s1 + $0x8] sm:$0xff]
    %vm16 = vcmask 261120
    %v17 = vsel %vm16, %v12, -inf
    %18 = vmax.xlane.f32.xlu0 %v17
    %v19 = vpop.xlane.xlu0 %18
    %v20 = vsel %vm16, %v13, -inf
    %21 = vmax.xlane.f32.xlu0 %v20
    %v22 = vpop.xlane.xlu0 %21
    %v23 = vsub.f32 %v12, %v19
    %v24 = vsub.f32 %v13, %v22
    %v25 = vmul.f32 %v23, 1.442695
    %v26 = vpow.pop %v25
    %v27 = vmul.f32 %v24, 1.442695
    %v28 = vpow.pop %v27
    %v29 = vsel %vm16, %v26, 0.0
    %30 = vadd.xlane.f32.xlu0 %v29
    %v31 = vpop.xlane.xlu0 %30
    %v32 = vsel %vm16, %v28, 0.0
    %33 = vadd.xlane.f32.xlu0 %v32
    %v34 = vpop.xlane.xlu0 %33
    %v35 = vlog2.pop %v31
    %v36 = vmul.f32 %v35, 0.6931472
    %v37 = vlog2.pop %v34
    %v38 = vmul.f32 %v37, 0.6931472
    %v39 = vadd.f32 %v19, %v36
    %v40 = vadd.f32 %v22, %v38
    %v41 = vsel %vm16, %v12, 0.0
    %42 = vadd.xlane.f32.xlu0 %v41
    %v43 = vpop.xlane.xlu0 %42
    %v44 = vsel %vm16, %v13, 0.0
    %45 = vadd.xlane.f32.xlu0 %v44
    %v46 = vpop.xlane.xlu0 %45
    %v47 = vlaneseq
    %v48 = vand.u32 %v47, 127
    %49 = vset.pattern.permute.xlu0 0
    %50 = vperm.xlu0 %49, %v14
    %v51 = vpop.permute.xlu0 %50
    %52 = vset.pattern.permute.xlu0 0
    %53 = vperm.xlu0 %52, %v15
    %v54 = vpop.permute.xlu0 %53
    %vm55 = vcmp.eq.s32.totalorder %v48, %v51
    %vm56 = vcmp.eq.s32.totalorder %v48, %v54
    %v57 = vsel %vm55, %v12, 0.0
    %v58 = vsel %vm56, %v13, 0.0
    %v59 = vsel %vm16, %v57, 0.0
    %60 = vadd.xlane.f32.xlu0 %v59
    %v61 = vpop.xlane.xlu0 %60
    %v62 = vsel %vm16, %v58, 0.0
    %63 = vadd.xlane.f32.xlu0 %v62
    %v64 = vpop.xlane.xlu0 %63
    %s65 = smul.u32 0, 16
    %v66 = vlaneseq
    %v67 = vshrl.u32 %v66, 7
    %v68 = vadd.s32 %v67, 8
    %v69 = vstv %s65
    %v70 = vadd.s32 %v69, %v67
    %v71 = vadd.s32 %v69, %v68
    %vm72 = vcmp.lt.s32.totalorder %v70, 16
    %vm73 = vcmp.lt.s32.totalorder %v71, 16
    %vm74 = vcmp.ne.s32.totalorder %v14, 4294967196
    %vm75 = vcmp.ne.s32.totalorder %v15, 4294967196
    %vm76 = vmand %vm72, %vm74
    %vm77 = vmand %vm73, %vm75
    %v78 = vmul.f32 %v39, 32.0
    %v79 = vmul.f32 %v40, 32.0
    %v80 = vsub.f32 %v78, %v43
    %v81 = vsub.f32 %v79, %v46
    %v82 = vsel %vm72, %v80, 0.0
    %v83 = vsel %vm73, %v81, 0.0
    %vm84 = vcmask 7168
    %v85 = vsel %vm84, %v82, 0.0
    %v86 = vsel %vm84, %v83, 0.0
    %v87 = vadd.f32 %v85, %v86
    %88 = vadd.xlane.f32.xlu0 %v87
    %v89 = vpop.xlane.xlu0 %88
    %v90 = vrot.slane %v89, 4
    %v91 = vadd.f32 %v89, %v90
    %v92 = vrot.slane %v91, 2
    %v93 = vadd.f32 %v91, %v92
    %v94 = vrot.slane %v93, 1
    %v95 = vadd.f32 %v93, %v94
    %s96 = vtos %v95
    %v97 = vsub.f32 %v39, %v61
    %v98 = vsub.f32 %v40, %v64
    %v99 = vsel %vm76, %v97, 0.0
    %v100 = vsel %vm77, %v98, 0.0
    %v101 = vsel %vm84, %v99, 0.0
    %v102 = vsel %vm84, %v100, 0.0
    %v103 = vadd.f32 %v101, %v102
    %104 = vadd.xlane.f32.xlu0 %v103
    %v105 = vpop.xlane.xlu0 %104
    %v106 = vrot.slane %v105, 4
    %v107 = vadd.f32 %v105, %v106
    %v108 = vrot.slane %v107, 2
    %v109 = vadd.f32 %v107, %v108
    %v110 = vrot.slane %v109, 1
    %v111 = vadd.f32 %v109, %v110
    %s112 = vtos %v111
    %v113 = vsel %vm76, 1.0, 0.0
    %v114 = vsel %vm77, 1.0, 0.0
    %v115 = vsel %vm84, %v113, 0.0
    %v116 = vsel %vm84, %v114, 0.0
    %v117 = vadd.f32 %v115, %v116
    %118 = vadd.xlane.f32.xlu0 %v117
    %v119 = vpop.xlane.xlu0 %118
    %v120 = vrot.slane %v119, 4
    %v121 = vadd.f32 %v119, %v120
    %v122 = vrot.slane %v121, 2
    %v123 = vadd.f32 %v121, %v122
    %v124 = vrot.slane %v123, 1
    %v125 = vadd.f32 %v123, %v124
    %s126 = vtos %v125
    %vm127 = vcmp.eq.s32.totalorder %v48, 0
    %vm128 = vcmp.eq.s32.totalorder %v48, 1
    %vm129 = vcmp.eq.s32.totalorder %v48, 2
    %v130 = vstv %s126
    %v131 = vsel %vm129, %v130, 0.0
    %v132 = vstv %s112
    %v133 = vsel %vm128, %v132, %v131
    %v134 = vstv %s96
    %v135 = vsel %vm127, %v134, %v133
    %vm136 = vcmp.eq.s32.totalorder %v67, 0
    %v137 = vsel %vm136, %v135, 0.0
    %138 = vst [vmem:[#allocation2] sm:$0xff] %v137
    // Predicated region
    $region10: #{tpu_custom_call.1} parent=1 // pred_check
      _
    $region11: #{tpu_custom_call.1} parent=1 // pred_check_branch
      %140 = sbr.rel (0) target = $region13
    $region12: #{tpu_custom_call.1} parent=1 // pred_region
      %s142 = ssub.s32 128, 128
      %143 = vsyncadd [#allocation3], %s142
      %s145 = sshll.u32 [#allocation2], 4
      %s146 = int_to_ptr.vmem [resolvable:$true] %s145
      %148 = dma.vmem_to_hbm [thread:$0]  %s146, 128, %s2, [#allocation3]
    $region13: #{tpu_custom_call.1} parent=1 // pred_fallthru
      _
    // Predicated region
    $region14: #{tpu_custom_call.1} parent=1 // pred_check
      _
    $region15: #{tpu_custom_call.1} parent=1 // pred_check_branch
      %150 = sbr.rel (0) target = $region17
    $region16: #{tpu_custom_call.1} parent=1 // pred_region
      %151 = dma.done [#allocation3], 128
    $region17: #{tpu_custom_call.1} parent=1 // pred_fallthru
      _
    %152 = vsyncpa [#allocation3], 1

</llo_original>
